<compile_context>
chip_gen: v5e
topology: v5e:2x2
jax: 0.10.0
libtpu: 0.0.40
codegen_flags: <defaults>
</compile_context>

<pallas_src>
import numpy as np
import jax
import jax.numpy as jnp
from jax.experimental import pallas as pl
from jax.experimental.pallas import tpu as pltpu


def _round_up(x, m):
    return ((x + m - 1) // m) * m


def edge_encoding_kernel(dots_ref, paths_ref, out_ref):
    # dots_ref : (E_pad, L)    f32, VMEM-resident; dots_ref[e, i] = <edge_vector[i], edge_attr[e]>
    # paths_ref: (L, TILE_P)   int32, -1 padded, lane-dense per hop
    # out_ref  : (1, TILE_P)   f32, lane-dense
    E_pad, L = dots_ref.shape
    tile_p = paths_ref.shape[1]

    dots = dots_ref[...]                                             # (E_pad, L)
    paths = paths_ref[...]                                           # (L, tile_p)

    # valid-hop count per pair, once per tile (small sublane reduce over L)
    cnt = jnp.sum((paths >= 0).astype(jnp.float32), axis=0, keepdims=True)  # (1, tile_p)

    eids = jax.lax.broadcasted_iota(jnp.int32, (E_pad, tile_p), 0)   # (E_pad, tile_p)

    num = jnp.zeros((1, tile_p), jnp.float32)
    # Static unroll over the (small) number of hops; peak live intermediate is
    # one (E_pad, tile_p) slab with pairs on lanes.
    for i in range(L):
        pid = paths[i:i + 1, :]                           # (1, tile_p), lane-dense ids
        eq = pid == eids                                  # (E_pad, tile_p) bool
        dcol = dots[:, i:i + 1]                           # (E_pad, 1), broadcast along lanes
        # pid == -1 matches nothing -> contributes 0; sublane-direction reduce.
        num = num + jnp.sum(jnp.where(eq, dcol, 0.0), axis=0, keepdims=True)

    # mean over valid hops; empty path -> 0/1 = 0  (== nan_to_num of NaN mean)
    out_ref[...] = num / jnp.maximum(cnt, 1.0)


def edge_encoding(edge_vector, edge_attr, dense_paths, n_nodes, tile_p=None):
    """edge_vector (L, edge_dim) f32, edge_attr (E, edge_dim) f32,
    dense_paths (N*N, L) int32 (-1 padded). Returns (N, N) f32."""
    P, L = dense_paths.shape
    E, D = edge_attr.shape

    # E is a sublane dimension in-kernel -> pad to a multiple of 8.
    E_pad = _round_up(max(E, 8), 8)
    if E_pad != E:
        edge_attr = jnp.pad(edge_attr, ((0, E_pad - E), (0, 0)))

    # Hoist the tiny dot-table matmul into XLA (was recomputed every grid step).
    # dots_t[e, i] = <edge_vector[i], edge_attr[e]>; padded rows are zero and
    # never selected by a valid edge id.
    dots_t = jnp.dot(edge_attr, edge_vector.T,
                     preferred_element_type=jnp.float32)             # (E_pad, L)

    # Pick tile_p from a VMEM budget: a few live (E_pad, tile_p) f32 slabs plus
    # double-buffered (L, tile_p) paths must fit comfortably under the v7x
    # scoped limit (32 MiB); v5e/v6e have more headroom.
    if tile_p is None:
        budget = 16 * 1024 * 1024
        k_live = 4
        tile_p = budget // (k_live * E_pad * 4)
        tile_p = max(128, min(4096, tile_p))

    P_min = _round_up(P, 128)
    # Guarantee >= 2 grid tiles when the pair dimension allows it, so
    # dimension_semantics=("parallel",) can shard across both v7x TensorCores.
    if P_min >= 256:
        tile_p = min(tile_p, _round_up(pl.cdiv(P_min, 2), 128))
    tile_p = _round_up(min(tile_p, P_min), 128)
    P_pad = _round_up(P, tile_p)

    # Pad the pair dimension (-1 rows contribute 0) and transpose so each tile
    # is a contiguous, lane-dense (L, tile_p) block.
    if P_pad != P:
        dense_paths = jnp.pad(dense_paths, ((0, P_pad - P), (0, 0)),
                              constant_values=-1)
    paths_t = dense_paths.T                                           # (L, P_pad)

    out = pl.pallas_call(
        edge_encoding_kernel,
        out_shape=jax.ShapeDtypeStruct((1, P_pad), jnp.float32),
        grid=(P_pad // tile_p,),
        in_specs=[
            pl.BlockSpec((E_pad, L), lambda i: (0, 0)),    # dot table, resident
            pl.BlockSpec((L, tile_p), lambda i: (0, i)),   # paths tile, streamed
        ],
        out_specs=pl.BlockSpec((1, tile_p), lambda i: (0, i)),
        compiler_params=pltpu.CompilerParams(
            dimension_semantics=("parallel",),
            vmem_limit_bytes=32 * 1024 * 1024),
    )(dots_t, paths_t)
    return out[0, :P].reshape(n_nodes, n_nodes)


def paths_dict_to_dense(edge_paths, n_nodes, max_path_distance, n_edges):
    dense = -np.ones((n_nodes, n_nodes, max_path_distance), dtype=np.int32)
    for src in edge_paths:
        for dst in edge_paths[src]:
            p = list(edge_paths[src][dst])[:max_path_distance]
            if len(p) > 0:
                p = np.asarray(p, dtype=np.int32)
                assert p.max() < n_edges, "path references an out-of-range edge id"
                dense[src, dst, : len(p)] = p
    return dense.reshape(n_nodes * n_nodes, max_path_distance)


def reference_numpy(edge_vector, edge_attr, edge_paths, n_nodes, max_path_distance):
    cij = np.zeros((n_nodes, n_nodes), dtype=np.float32)
    for src in edge_paths:
        for dst in edge_paths[src]:
            path_ij = list(edge_paths[src][dst])[:max_path_distance]
            if len(path_ij) == 0:
                cij[src, dst] = 0.0  # nan_to_num of NaN mean
                continue
            w = edge_vector[: len(path_ij)]
            e = edge_attr[np.asarray(path_ij)]
            cij[src, dst] = float((w * e).sum(axis=1).mean())
    return cij


def _make_case(n_nodes, n_edges, edge_dim, max_path_distance, seed):
    key = jax.random.PRNGKey(0)
    k_ev, k_ea = jax.random.split(jax.random.fold_in(key, seed), 2)
    edge_vector = jax.random.normal(k_ev, (max_path_distance, edge_dim), jnp.float32)
    edge_attr = jax.random.normal(k_ea, (n_edges, edge_dim), jnp.float32)

    rng = np.random.RandomState(seed)
    edge_paths = {}
    for src in range(n_nodes):
        edge_paths[src] = {}
        for dst in range(n_nodes):
            if src == dst or rng.rand() < 0.3:
                continue
            plen = int(rng.randint(1, max_path_distance + 3))
            edge_paths[src][dst] = [int(e) for e in rng.randint(0, n_edges, size=plen)]
    return edge_vector, edge_attr, edge_paths


def _run_case(n_nodes, n_edges, edge_dim, max_path_distance, seed):
    edge_vector, edge_attr, edge_paths = _make_case(
        n_nodes, n_edges, edge_dim, max_path_distance, seed)
    dense_paths = jnp.asarray(
        paths_dict_to_dense(edge_paths, n_nodes, max_path_distance, n_edges))

    cij = edge_encoding(edge_vector, edge_attr, dense_paths, n_nodes)
    cij = jax.block_until_ready(cij)

    ref = reference_numpy(
        np.asarray(edge_vector), np.asarray(edge_attr),
        edge_paths, n_nodes, max_path_distance,
    )
    np.testing.assert_allclose(np.asarray(cij), ref, rtol=1e-5, atol=1e-5)


if __name__ == "__main__":
    # Small case (single grid tile), module-consistent shapes.
    _run_case(n_nodes=8, n_edges=16, edge_dim=4, max_path_distance=5, seed=0)
    # Larger case exercising the multi-tile / parallel-grid path.
    _run_case(n_nodes=24, n_edges=40, edge_dim=4, max_path_distance=5, seed=1)
    print("KERNEL_OK")
</pallas_src>

<mosaic_0001>
module attributes {stable_mosaic.version = 11 : i64} {
  func.func @edge_encoding_kernel(%arg0: i32, %arg1: memref<16x5xf32, #tpu.memory_space<vmem>>, %arg2: memref<5x128xi32, #tpu.memory_space<vmem>>, %arg3: memref<1x128xf32, #tpu.memory_space<vmem>>) attributes {dimension_semantics = [#tpu.dimension_semantics<parallel>], iteration_bounds = array<i64: 1>, scalar_prefetch = 0 : i64, scratch_operands = 0 : i64, tpu.core_type = #tpu.core_type<tc>, window_params = [{pipeline_mode = #tpu.pipeline_mode<synchronous>, transform_indices = @transform_0, window_bounds = array<i64: 16, 5>}, {transform_indices = @transform_1, window_bounds = array<i64: 5, 128>}, {transform_indices = @transform_2, window_bounds = array<i64: 1, 128>}]} {
    %c0 = arith.constant 0 : index
    %c0_0 = arith.constant 0 : index
    %0 = vector.load %arg1[%c0, %c0_0] : memref<16x5xf32, #tpu.memory_space<vmem>>, vector<16x5xf32>
    %c0_1 = arith.constant 0 : index
    %c0_2 = arith.constant 0 : index
    %1 = vector.load %arg2[%c0_1, %c0_2] : memref<5x128xi32, #tpu.memory_space<vmem>>, vector<5x128xi32>
    %c0_i32 = arith.constant 0 : i32
    %2 = vector.broadcast %c0_i32 : i32 to vector<5x128xi32>
    %3 = arith.cmpi sge, %1, %2 : vector<5x128xi32>
    %4 = arith.extui %3 : vector<5x128xi1> to vector<5x128xi32>
    %5 = arith.sitofp %4 : vector<5x128xi32> to vector<5x128xf32>
    %cst = arith.constant dense<0.000000e+00> : vector<128xf32>
    %6 = vector.multi_reduction <add>, %5, %cst [0] : vector<5x128xf32> to vector<128xf32>
    %7 = vector.shape_cast %6 : vector<128xf32> to vector<1x128xf32>
    %8 = tpu.iota {dimensions = array<i32: 0>} : vector<16x128xi32>
    %cst_3 = arith.constant 0.000000e+00 : f32
    %9 = vector.broadcast %cst_3 : f32 to vector<1x128xf32>
    %10 = vector.extract_strided_slice %1 {offsets = [0, 0], sizes = [1, 128], strides = [1, 1]} : vector<5x128xi32> to vector<1x128xi32>
    %11 = vector.broadcast %10 : vector<1x128xi32> to vector<16x128xi32>
    %12 = arith.cmpi eq, %11, %8 : vector<16x128xi32>
    %13 = vector.extract_strided_slice %0 {offsets = [0, 0], sizes = [16, 1], strides = [1, 1]} : vector<16x5xf32> to vector<16x1xf32>
    %cst_4 = arith.constant 0.000000e+00 : f32
    %14 = vector.shape_cast %13 : vector<16x1xf32> to vector<16x1xf32>
    %15 = vector.broadcast %14 : vector<16x1xf32> to vector<16x128xf32>
    %16 = vector.broadcast %cst_4 : f32 to vector<16x128xf32>
    %17 = arith.select %12, %15, %16 : vector<16x128xi1>, vector<16x128xf32>
    %cst_5 = arith.constant dense<0.000000e+00> : vector<128xf32>
    %18 = vector.multi_reduction <add>, %17, %cst_5 [0] : vector<16x128xf32> to vector<128xf32>
    %19 = vector.shape_cast %18 : vector<128xf32> to vector<1x128xf32>
    %20 = arith.addf %9, %19 : vector<1x128xf32>
    %21 = vector.extract_strided_slice %1 {offsets = [1, 0], sizes = [1, 128], strides = [1, 1]} : vector<5x128xi32> to vector<1x128xi32>
    %22 = vector.broadcast %21 : vector<1x128xi32> to vector<16x128xi32>
    %23 = arith.cmpi eq, %22, %8 : vector<16x128xi32>
    %24 = vector.extract_strided_slice %0 {offsets = [0, 1], sizes = [16, 1], strides = [1, 1]} : vector<16x5xf32> to vector<16x1xf32>
    %cst_6 = arith.constant 0.000000e+00 : f32
    %25 = vector.shape_cast %24 : vector<16x1xf32> to vector<16x1xf32>
    %26 = vector.broadcast %25 : vector<16x1xf32> to vector<16x128xf32>
    %27 = vector.broadcast %cst_6 : f32 to vector<16x128xf32>
    %28 = arith.select %23, %26, %27 : vector<16x128xi1>, vector<16x128xf32>
    %cst_7 = arith.constant dense<0.000000e+00> : vector<128xf32>
    %29 = vector.multi_reduction <add>, %28, %cst_7 [0] : vector<16x128xf32> to vector<128xf32>
    %30 = vector.shape_cast %29 : vector<128xf32> to vector<1x128xf32>
    %31 = arith.addf %20, %30 : vector<1x128xf32>
    %32 = vector.extract_strided_slice %1 {offsets = [2, 0], sizes = [1, 128], strides = [1, 1]} : vector<5x128xi32> to vector<1x128xi32>
    %33 = vector.broadcast %32 : vector<1x128xi32> to vector<16x128xi32>
    %34 = arith.cmpi eq, %33, %8 : vector<16x128xi32>
    %35 = vector.extract_strided_slice %0 {offsets = [0, 2], sizes = [16, 1], strides = [1, 1]} : vector<16x5xf32> to vector<16x1xf32>
    %cst_8 = arith.constant 0.000000e+00 : f32
    %36 = vector.shape_cast %35 : vector<16x1xf32> to vector<16x1xf32>
    %37 = vector.broadcast %36 : vector<16x1xf32> to vector<16x128xf32>
    %38 = vector.broadcast %cst_8 : f32 to vector<16x128xf32>
    %39 = arith.select %34, %37, %38 : vector<16x128xi1>, vector<16x128xf32>
    %cst_9 = arith.constant dense<0.000000e+00> : vector<128xf32>
    %40 = vector.multi_reduction <add>, %39, %cst_9 [0] : vector<16x128xf32> to vector<128xf32>
    %41 = vector.shape_cast %40 : vector<128xf32> to vector<1x128xf32>
    %42 = arith.addf %31, %41 : vector<1x128xf32>
    %43 = vector.extract_strided_slice %1 {offsets = [3, 0], sizes = [1, 128], strides = [1, 1]} : vector<5x128xi32> to vector<1x128xi32>
    %44 = vector.broadcast %43 : vector<1x128xi32> to vector<16x128xi32>
    %45 = arith.cmpi eq, %44, %8 : vector<16x128xi32>
    %46 = vector.extract_strided_slice %0 {offsets = [0, 3], sizes = [16, 1], strides = [1, 1]} : vector<16x5xf32> to vector<16x1xf32>
    %cst_10 = arith.constant 0.000000e+00 : f32
    %47 = vector.shape_cast %46 : vector<16x1xf32> to vector<16x1xf32>
    %48 = vector.broadcast %47 : vector<16x1xf32> to vector<16x128xf32>
    %49 = vector.broadcast %cst_10 : f32 to vector<16x128xf32>
    %50 = arith.select %45, %48, %49 : vector<16x128xi1>, vector<16x128xf32>
    %cst_11 = arith.constant dense<0.000000e+00> : vector<128xf32>
    %51 = vector.multi_reduction <add>, %50, %cst_11 [0] : vector<16x128xf32> to vector<128xf32>
    %52 = vector.shape_cast %51 : vector<128xf32> to vector<1x128xf32>
    %53 = arith.addf %42, %52 : vector<1x128xf32>
    %54 = vector.extract_strided_slice %1 {offsets = [4, 0], sizes = [1, 128], strides = [1, 1]} : vector<5x128xi32> to vector<1x128xi32>
    %55 = vector.broadcast %54 : vector<1x128xi32> to vector<16x128xi32>
    %56 = arith.cmpi eq, %55, %8 : vector<16x128xi32>
    %57 = vector.extract_strided_slice %0 {offsets = [0, 4], sizes = [16, 1], strides = [1, 1]} : vector<16x5xf32> to vector<16x1xf32>
    %cst_12 = arith.constant 0.000000e+00 : f32
    %58 = vector.shape_cast %57 : vector<16x1xf32> to vector<16x1xf32>
    %59 = vector.broadcast %58 : vector<16x1xf32> to vector<16x128xf32>
    %60 = vector.broadcast %cst_12 : f32 to vector<16x128xf32>
    %61 = arith.select %56, %59, %60 : vector<16x128xi1>, vector<16x128xf32>
    %cst_13 = arith.constant dense<0.000000e+00> : vector<128xf32>
    %62 = vector.multi_reduction <add>, %61, %cst_13 [0] : vector<16x128xf32> to vector<128xf32>
    %63 = vector.shape_cast %62 : vector<128xf32> to vector<1x128xf32>
    %64 = arith.addf %53, %63 : vector<1x128xf32>
    %cst_14 = arith.constant 1.000000e+00 : f32
    %65 = vector.broadcast %cst_14 : f32 to vector<1x128xf32>
    %66 = arith.maximumf %7, %65 : vector<1x128xf32>
    %67 = arith.divf %64, %66 : vector<1x128xf32>
    %c0_15 = arith.constant 0 : index
    %c0_16 = arith.constant 0 : index
    %68 = vector.load %arg3[%c0_15, %c0_16] : memref<1x128xf32, #tpu.memory_space<vmem>>, vector<1x128xf32>
    tpu.vector_store %arg3[%c0_15, %c0_16], %67 {strides = array<i32>} : memref<1x128xf32, #tpu.memory_space<vmem>>, vector<1x128xf32>,
    return
  }
  func.func @transform_0(%arg0: i32) -> (i32, i32) {
    %c0_i32 = arith.constant 0 : i32
    %c0_i32_0 = arith.constant 0 : i32
    %c0_i32_1 = arith.constant 0 : i32
    return %c0_i32, %c0_i32_0 : i32, i32
  }
  func.func @transform_1(%arg0: i32) -> (i32, i32) {
    %c0_i32 = arith.constant 0 : i32
    %c0_i32_0 = arith.constant 0 : i32
    return %c0_i32, %arg0 : i32, i32
  }
  func.func @transform_2(%arg0: i32) -> (i32, i32) {
    %c0_i32 = arith.constant 0 : i32
    %c0_i32_0 = arith.constant 0 : i32
    return %c0_i32, %arg0 : i32, i32
  }
}

</mosaic_0001>

<llo_original>
// kernel: tpu_custom_call.1
$region0: #{tpu_custom_call.1}
  #allocation0 [shape = 'u32[]', space=smem, size = 0x4, offset = 0x4, fixed_abs, tag = 'smem constant byte address 0x4 - core index']
  #allocation1 [shape = 'u32[72,128]{1,0:T(1,128)}', space=vmem, size = 0x9000, scoped, tag = 'internal scratch']
  %s0 = inlined_call_operand.vmem [shape: f32[16,5], index: 0, kind: input, shape index: {}]
  %s1 = inlined_call_operand.vmem [shape: s32[5,128], index: 1, kind: input, shape index: {}]
  %s2 = inlined_call_operand.hbm [shape: f32[1,128], index: 2, kind: output, shape index: {}]
  %s3 = sld [smem:[#allocation0]]
  $region18: #{tpu_custom_call.1} parent=0
    _
  %s5 = ssub.s32 1, %s3
  %s6 = scalar_select 0, %s5, %s3
  $region1: #{tpu_custom_call.1} parent=0
    #allocation2 [shape = 'u8[512]{0}', space=vmem, size = 0x400, scoped, tag = 'output window, operand 0, single buffered']
    #allocation3 [shape = 's32[1]{0}', space=sflag, size = 0x4, scoped, tag = 'scoped memory for tpu_custom_call.1']
    %7 = vsyncpa [#allocation3], 0
    // Predicated region
    $region2: #{tpu_custom_call.1} parent=1 // pred_check
      _
    $region3: #{tpu_custom_call.1} parent=1 // pred_check_branch
      %9 = sbr.rel (0) target = $region5
    $region4: #{tpu_custom_call.1} parent=1 // pred_region
      _
    $region5: #{tpu_custom_call.1} parent=1 // pred_fallthru
      _
    // Predicated region
    $region6: #{tpu_custom_call.1} parent=1 // pred_check
      _
    $region7: #{tpu_custom_call.1} parent=1 // pred_check_branch
      %11 = sbr.rel (0) target = $region9
    $region8: #{tpu_custom_call.1} parent=1 // pred_region
      _
    $region9: #{tpu_custom_call.1} parent=1 // pred_fallthru
      _
    %v12 = vld [vmem:[%s0] sm:$0xff]
    %v13 = vld [vmem:[%s0 + $0x8] sm:$0xff]
    %v14 = vld [vmem:[%s1] sm:$0x1f]
    %vm15 = vcmp.ge.s32.totalorder %v14, 0
    %v16 = vsel %vm15, 1, 0
    %v17 = vcvt.s32.f32 %v16
    %vm18 = vcmask 1044480
    %v19 = vsel %vm18, %v17, 0.0
    %v20 = vrot.slane %v19, 4
    %v21 = vadd.f32 %v19, %v20
    %v22 = vrot.slane %v21, 2
    %v23 = vadd.f32 %v21, %v22
    %v24 = vrot.slane %v23, 1
    %v25 = vadd.f32 %v23, %v24
    %v26 = vlaneseq
    %v27 = vshrl.u32 %v26, 7
    %v28 = vadd.s32 %v27, 8
    %v29 = vperm.slane %v14, 0
    %vm30 = vcmp.eq.s32.totalorder %v29, %v27
    %vm31 = vcmp.eq.s32.totalorder %v29, %v28
    %33 = vset.pattern.permute.xlu0 0
    %34 = vperm.xlu0 %33, %v12
    %v35 = vpop.permute.xlu0 %34
    %38 = vset.pattern.permute.xlu0 0
    %39 = vperm.xlu0 %38, %v13
    %v40 = vpop.permute.xlu0 %39
    %v42 = vsel %vm30, %v35, 0.0
    %v43 = vsel %vm31, %v40, 0.0
    %v44 = vadd.f32 %v42, %v43
    %v45 = vrot.slane %v44, 4
    %v46 = vadd.f32 %v44, %v45
    %v47 = vrot.slane %v46, 2
    %v48 = vadd.f32 %v46, %v47
    %v49 = vrot.slane %v48, 1
    %v50 = vadd.f32 %v48, %v49
    %v51 = vadd.f32 %v50, 0.0
    %v52 = vperm.slane %v14, 1
    %vm53 = vcmp.eq.s32.totalorder %v52, %v27
    %vm54 = vcmp.eq.s32.totalorder %v52, %v28
    %55 = vset.pattern.permute.xlu0 1
    %56 = vperm.xlu0 %55, %v12
    %v57 = vpop.permute.xlu0 %56
    %59 = vset.pattern.permute.xlu0 1
    %60 = vperm.xlu0 %59, %v13
    %v61 = vpop.permute.xlu0 %60
    %v63 = vsel %vm53, %v57, 0.0
    %v64 = vsel %vm54, %v61, 0.0
    %v65 = vadd.f32 %v63, %v64
    %v66 = vrot.slane %v65, 4
    %v67 = vadd.f32 %v65, %v66
    %v68 = vrot.slane %v67, 2
    %v69 = vadd.f32 %v67, %v68
    %v70 = vrot.slane %v69, 1
    %v71 = vadd.f32 %v69, %v70
    %v72 = vadd.f32 %v51, %v71
    %v73 = vperm.slane %v14, 2
    %vm74 = vcmp.eq.s32.totalorder %v73, %v27
    %vm75 = vcmp.eq.s32.totalorder %v73, %v28
    %76 = vset.pattern.permute.xlu0 2
    %77 = vperm.xlu0 %76, %v12
    %v78 = vpop.permute.xlu0 %77
    %80 = vset.pattern.permute.xlu0 2
    %81 = vperm.xlu0 %80, %v13
    %v82 = vpop.permute.xlu0 %81
    %v84 = vsel %vm74, %v78, 0.0
    %v85 = vsel %vm75, %v82, 0.0
    %v86 = vadd.f32 %v84, %v85
    %v87 = vrot.slane %v86, 4
    %v88 = vadd.f32 %v86, %v87
    %v89 = vrot.slane %v88, 2
    %v90 = vadd.f32 %v88, %v89
    %v91 = vrot.slane %v90, 1
    %v92 = vadd.f32 %v90, %v91
    %v93 = vadd.f32 %v72, %v92
    %v94 = vperm.slane %v14, 3
    %vm95 = vcmp.eq.s32.totalorder %v94, %v27
    %vm96 = vcmp.eq.s32.totalorder %v94, %v28
    %97 = vset.pattern.permute.xlu0 3
    %98 = vperm.xlu0 %97, %v12
    %v99 = vpop.permute.xlu0 %98
    %101 = vset.pattern.permute.xlu0 3
    %102 = vperm.xlu0 %101, %v13
    %v103 = vpop.permute.xlu0 %102
    %v105 = vsel %vm95, %v99, 0.0
    %v106 = vsel %vm96, %v103, 0.0
    %v107 = vadd.f32 %v105, %v106
    %v108 = vrot.slane %v107, 4
    %v109 = vadd.f32 %v107, %v108
    %v110 = vrot.slane %v109, 2
    %v111 = vadd.f32 %v109, %v110
    %v112 = vrot.slane %v111, 1
    %v113 = vadd.f32 %v111, %v112
    %v114 = vadd.f32 %v93, %v113
    %v115 = vperm.slane %v14, 4
    %vm116 = vcmp.eq.s32.totalorder %v115, %v27
    %vm117 = vcmp.eq.s32.totalorder %v115, %v28
    %118 = vset.pattern.permute.xlu0 4
    %119 = vperm.xlu0 %118, %v12
    %v120 = vpop.permute.xlu0 %119
    %122 = vset.pattern.permute.xlu0 4
    %123 = vperm.xlu0 %122, %v13
    %v124 = vpop.permute.xlu0 %123
    %v126 = vsel %vm116, %v120, 0.0
    %v127 = vsel %vm117, %v124, 0.0
    %v128 = vadd.f32 %v126, %v127
    %v129 = vrot.slane %v128, 4
    %v130 = vadd.f32 %v128, %v129
    %v131 = vrot.slane %v130, 2
    %v132 = vadd.f32 %v130, %v131
    %v133 = vrot.slane %v132, 1
    %v134 = vadd.f32 %v132, %v133
    %v135 = vadd.f32 %v114, %v134
    %v136 = vmax.f32 %v25, 1.0
    %v137 = vrcp.pop %v136
    %v138 = vmul.f32 %v136, %v137
    %v139 = vsub.f32 1.0, %v138
    %v140 = vmul.f32 %v137, %v139
    %v141 = vadd.f32 %v137, %v140
    %vm142 = vweird.f32 %v136
    %vm143 = vweird.f32 %v137
    %vm144 = vmor %vm142, %vm143
    %v145 = vsel %vm144, %v137, %v141
    %v146 = vand.u32 2147483647, %v136
    %vm147 = vcmp.eq.f32.partialorder %v146, 8.507059e+37
    %v148 = vand.u32 %v136, 2147483648
    %v149 = vor.u32 1.1754944e-38, %v148
    %v150 = vsel %vm147, %v149, %v145
    %v151 = vmul.f32 %v135, %v150
    %152 = vst [vmem:[#allocation2] sm:$0x1] %v151
    // Predicated region
    $region10: #{tpu_custom_call.1} parent=1 // pred_check
      _
    $region11: #{tpu_custom_call.1} parent=1 // pred_check_branch
      %154 = sbr.rel (0) target = $region13
    $region12: #{tpu_custom_call.1} parent=1 // pred_region
      %156 = vsyncadd [#allocation3], 0
      %s158 = sshll.u32 [#allocation2], 4
      %s159 = int_to_ptr.vmem [resolvable:$true] %s158
      %s160 = sshll.u32 %s2, 4
      %s161 = int_to_ptr.hbm [resolvable:$true] %s160
      %163 = dma.vmem_to_hbm [thread:$0]  %s159, 16, %s161, [#allocation3]
    $region13: #{tpu_custom_call.1} parent=1 // pred_fallthru
      _
    // Predicated region
    $region14: #{tpu_custom_call.1} parent=1 // pred_check
      _
    $region15: #{tpu_custom_call.1} parent=1 // pred_check_branch
      %165 = sbr.rel (0) target = $region17
    $region16: #{tpu_custom_call.1} parent=1 // pred_region
      %167 = dma.done [#allocation3], 16
    $region17: #{tpu_custom_call.1} parent=1 // pred_fallthru
      _
    %168 = vsyncpa [#allocation3], 1

</llo_original>
